<compile_context>
chip_gen: v7x
topology: tpu7x:2x2x1
jax: 0.10.0
libtpu: 0.0.40
codegen_flags: <defaults>
</compile_context>

<pallas_src>
import jax
import jax.numpy as jnp
from jax import lax
from jax.experimental import pallas as pl
from jax.experimental.pallas import tpu as pltpu


# ---------------------------------------------------------------------------
# Sizes (small, deterministic)
# ---------------------------------------------------------------------------
B = 2          # batch (graphs / prompts)
H = 32         # real hidden size
HP = 128       # lane-padded hidden size
V = 64         # real vocab size
VP = 128       # lane-padded vocab size
L = 8          # seq len of graph-query / entity / relation descriptions
LP = 8         # prompt seq len
NE = 8         # number of entities (nodes)
NR = 4         # number of relations
E = 16         # number of edges (x_coo rows)
NTOT = NE + NR + B       # pooled sequences, concatenated [entities; relations; query]
NTL = NTOT * L           # pooled token rows (112)
TOK_ROWS = NTL + B * LP  # all token rows (128) -> native MXU M for the one-hot
NSEL = 2 * NE + NR       # rows of the stacked projected edge table (20)


def _vmem():
    return pl.BlockSpec(memory_space=pltpu.MemorySpace.VMEM)


# ---------------------------------------------------------------------------
# Single fused kernel: graph_module + text_module
# ---------------------------------------------------------------------------
def lmkbc_fused_kernel(ids_ref, idx_ref, pool_ref, tok_ref, wcat_ref,
                       bias_ref, w1_ref, wlm_ref, out_ref):
    f32 = jnp.float32
    i32 = jnp.int32

    # --- 1. one masked one-hot for ALL tokens (pooled + prompt). Masked-out
    #        tokens were pre-set to id = -1 on the host so they match nothing.
    ids = ids_ref[...]                                                  # (128, 1)
    onehot = (ids == lax.broadcasted_iota(i32, (TOK_ROWS, VP), 1)).astype(f32)

    # --- 2. segment-sum the pooled one-hots with the precomputed pool matrix,
    #        then ONE shared token-table matmul for pooled segments + prompt.
    agg = jnp.dot(pool_ref[...], onehot[:NTL],
                  preferred_element_type=f32)                           # (NTOT, VP)
    cnt = jnp.maximum(jnp.sum(agg, axis=-1, keepdims=True), 1.0)        # (NTOT, 1)

    stacked = jnp.concatenate([onehot[NTL:], agg], axis=0)              # (B*LP+NTOT, VP)
    emb = jnp.dot(stacked, tok_ref[...], preferred_element_type=f32)    # (B*LP+NTOT, HP)
    x = emb[:B * LP]                                                    # prompt embeddings
    pooled = emb[B * LP:] / cnt                                         # (NTOT, HP)
    q_emb = pooled[NE + NR:]                                            # (B, HP)

    # --- 3. edge fusion, reassociated: project the small entity/relation tables
    #        once, then gather per-edge rows with ONE combined selector matmul.
    proj = jnp.dot(pooled[:NE + NR], wcat_ref[...],
                   preferred_element_type=f32)                          # (NE+NR, 3*HP)
    proj_table = jnp.concatenate(
        [proj[0:NE, 0:HP],                  # entities @ wf_h
         proj[NE:NE + NR, HP:2 * HP],       # relations @ wf_r
         proj[0:NE, 2 * HP:3 * HP]],        # entities @ wf_t
        axis=0)                                                         # (NSEL, HP)

    idx = idx_ref[...]                                                  # (E, 4) i32
    sel_iota = lax.broadcasted_iota(i32, (E, NSEL), 1)
    sel3 = ((idx[:, 0:1] == sel_iota).astype(f32)
            + (idx[:, 1:2] == sel_iota).astype(f32)
            + (idx[:, 2:3] == sel_iota).astype(f32))                    # (E, NSEL)
    bf = bias_ref[0:1, :]
    fused = jnp.tanh(jnp.dot(sel3, proj_table, preferred_element_type=f32) + bf)

    # --- 4. per-edge sigmoid score against its graph's query embedding.
    #        B is tiny -> VPU selects instead of degenerate (K/N = B) matmuls.
    eb = idx[:, 3:4]                                                    # (E, 1)
    q_per_edge = jnp.zeros((E, HP), f32)
    for b in range(B):
        q_per_edge = q_per_edge + (eb == b).astype(f32) * q_emb[b:b + 1]
    score = jax.nn.sigmoid(
        jnp.sum(fused * q_per_edge, axis=-1, keepdims=True))            # (E, 1)
    weighted = fused * score                                            # (E, HP)

    # --- 5. per-graph aggregation: masked sublane reductions (B=2). Each stats
    #        row packs subgraph_emb in lanes :H and mean_fused_score in lane H
    #        (col_h is a precomputed one-hot row, no reliance on weight padding).
    col_h = bias_ref[2:3, :]                                            # (1, HP)
    sub_rows, stats_rows = [], []
    for b in range(B):
        m = (eb == b).astype(f32)                                       # (E, 1)
        c = jnp.maximum(jnp.sum(m, axis=0, keepdims=True), 1.0)         # (1, 1)
        sub_b = jnp.sum(weighted * m, axis=0, keepdims=True) / c        # (1, HP)
        mean_b = jnp.sum(score * m, axis=0, keepdims=True) / c          # (1, 1)
        sub_rows.append(sub_b)
        stats_rows.append(sub_b * (1.0 - col_h) + mean_b * col_h)

    # --- 6. text module: subgraph conditioning + GELU MLP + LM head.
    sub_bcast = jnp.concatenate(
        [jnp.broadcast_to(sub_rows[b], (LP, HP)) for b in range(B)], axis=0)
    x = x + sub_bcast
    b1 = bias_ref[1:2, :]
    # TODO(synk): PyTorch nn.GELU default is exact (erf); tanh approximation kept.
    h1 = jax.nn.gelu(jnp.dot(x, w1_ref[...], preferred_element_type=f32) + b1,
                     approximate=True)                                  # (B*LP, HP)
    logits = jnp.dot(h1, wlm_ref[...], preferred_element_type=f32)      # (B*LP, VP)

    # one lane-dense output slab: logits rows, then B stats rows
    out_ref[...] = jnp.concatenate([logits] + stats_rows, axis=0)       # (B*LP+B, VP)


def fused_forward(params, ids_all, idx_slab):
    return pl.pallas_call(
        lmkbc_fused_kernel,
        out_shape=jax.ShapeDtypeStruct((B * LP + B, VP), jnp.float32),
        in_specs=[_vmem()] * 8,
        out_specs=_vmem(),
    )(ids_all, idx_slab, params["pool"], params["tok_emb"], params["wf_cat"],
      params["bias"], params["w1"], params["wlm"])


# ---------------------------------------------------------------------------
# Parameters (deterministic synthetic init, lane-padded / constants hoisted ONCE)
# ---------------------------------------------------------------------------
def _pad2(x, rows, cols):
    return jnp.zeros((rows, cols), jnp.float32).at[:x.shape[0], :x.shape[1]].set(x)


def init_params():
    keys = jax.random.split(jax.random.PRNGKey(42), 8)
    scale = 0.02
    tok = scale * jax.random.normal(keys[0], (V, H), jnp.float32)
    wf_h = scale * jax.random.normal(keys[1], (H, H), jnp.float32)
    wf_r = scale * jax.random.normal(keys[2], (H, H), jnp.float32)
    wf_t = scale * jax.random.normal(keys[3], (H, H), jnp.float32)
    w1 = scale * jax.random.normal(keys[4], (H, H), jnp.float32)
    wlm = scale * jax.random.normal(keys[5], (H, V), jnp.float32)
    bf = scale * jax.random.normal(keys[6], (1, H), jnp.float32)
    b1 = scale * jax.random.normal(keys[7], (1, H), jnp.float32)

    # constant segment-pool matrix (input-independent, hoisted out of the kernel)
    rows = jnp.arange(NTOT, dtype=jnp.int32)[:, None]
    cols = jnp.arange(NTL, dtype=jnp.int32)[None, :]
    pool = ((cols // L) == rows).astype(jnp.float32)                    # (NTOT, NTL)

    # bias slab: row 0 = edge-fusion bias, row 1 = MLP bias, row 2 = one-hot(lane H)
    col_h = (jnp.arange(HP) == H).astype(jnp.float32)[None, :]
    bias = jnp.concatenate([_pad2(bf, 1, HP), _pad2(b1, 1, HP), col_h], axis=0)

    return {
        "pool": pool,
        "tok_emb": _pad2(tok, VP, HP),                                  # (VP, HP)
        # column-stacked so the three edge projections are ONE (HP, 3*HP) matmul
        "wf_cat": jnp.concatenate([_pad2(wf_h, HP, HP), _pad2(wf_r, HP, HP),
                                   _pad2(wf_t, HP, HP)], axis=1),       # (HP, 3*HP)
        "bias": bias,                                                   # (3, HP)
        "w1": _pad2(w1, HP, HP),
        "wlm": _pad2(wlm, HP, VP),
    }


# ---------------------------------------------------------------------------
# Full ModelForLMKBC forward (glue = int index prep only; one pallas_call)
# ---------------------------------------------------------------------------
def model_forward(params,
                  graph_query_input_ids, graph_query_attention_mask,
                  prompt_input_ids, prompt_attention_mask,
                  entities_input_ids, entities_attention_mask,
                  relations_input_ids, relations_attention_mask,
                  x_coo, batch):
    # edge -> graph assignment (also a returned output)
    edge_batch = jnp.take(batch, x_coo[:, 0], axis=0)                   # (E,)

    pooled_ids = jnp.concatenate(
        [entities_input_ids, relations_input_ids, graph_query_input_ids], axis=0)
    pooled_mask = jnp.concatenate(
        [entities_attention_mask, relations_attention_mask,
         graph_query_attention_mask], axis=0)
    # pre-mask: masked-out tokens get id -1, so they never hit the in-kernel one-hot
    pooled_ids = jnp.where(pooled_mask > 0, pooled_ids, -1)
    prompt_ids = jnp.where(prompt_attention_mask > 0, prompt_input_ids, -1)
    ids_all = jnp.concatenate(
        [pooled_ids.reshape(NTL), prompt_ids.reshape(B * LP)],
        axis=0).reshape(TOK_ROWS, 1).astype(jnp.int32)

    # one packed edge-index slab; offsets pre-applied to address the stacked
    # projected table [ent@wf_h ; rel@wf_r ; ent@wf_t]
    idx_slab = jnp.stack([x_coo[:, 0],
                          x_coo[:, 1] + NE,
                          x_coo[:, 2] + NE + NR,
                          edge_batch], axis=1).astype(jnp.int32)         # (E, 4)

    slab = fused_forward(params, ids_all, idx_slab)
    out = slab[:B * LP, :V].reshape(B, LP, V)                            # (B, LP, V)
    mean_fused_score = slab[B * LP:, H]                                  # (B,)
    return out, mean_fused_score, edge_batch


# ---------------------------------------------------------------------------
# Pure-JAX reference (unpadded math) for a correctness check
# ---------------------------------------------------------------------------
def reference_forward(params,
                      gq_ids, gq_mask, p_ids, p_mask,
                      e_ids, e_mask, r_ids, r_mask, x_coo, batch):
    tok = params["tok_emb"][:V, :H]
    wf_h = params["wf_cat"][:H, 0:H]
    wf_r = params["wf_cat"][:H, HP:HP + H]
    wf_t = params["wf_cat"][:H, 2 * HP:2 * HP + H]
    bf = params["bias"][0:1, :H]
    b1 = params["bias"][1:2, :H]
    w1 = params["w1"][:H, :H]
    wlm = params["wlm"][:H, :V]

    def pool(ids, mask):
        emb = jnp.take(tok, ids, axis=0)
        m = mask.astype(jnp.float32)
        s = jnp.sum(emb * m[:, :, None], axis=1)
        c = jnp.maximum(jnp.sum(m, axis=1, keepdims=True), 1.0)
        return s / c

    q_emb = pool(gq_ids, gq_mask)
    ent = pool(e_ids, e_mask)
    relm = pool(r_ids, r_mask)
    head = ent[x_coo[:, 0]]
    rel = relm[x_coo[:, 1]]
    tail = ent[x_coo[:, 2]]
    edge_batch = batch[x_coo[:, 0]]
    fused = jnp.tanh(head @ wf_h + rel @ wf_r + tail @ wf_t + bf)
    q_pe = q_emb[edge_batch]
    score = jax.nn.sigmoid(jnp.sum(fused * q_pe, axis=-1, keepdims=True))
    seg = (edge_batch[None, :] ==
           jnp.arange(B, dtype=edge_batch.dtype)[:, None]).astype(jnp.float32)
    cnt = jnp.maximum(jnp.sum(seg, axis=-1, keepdims=True), 1.0)
    mean_fused = (seg @ score)[:, 0] / cnt[:, 0]
    sub = (seg @ (fused * score)) / cnt
    pe = jnp.take(tok, p_ids, axis=0) * p_mask.astype(jnp.float32)[:, :, None]
    x = pe.reshape(B * LP, H) + jnp.repeat(sub, LP, axis=0)
    h1 = jax.nn.gelu(x @ w1 + b1, approximate=True)
    out = (h1 @ wlm).reshape(B, LP, V)
    return out, mean_fused, edge_batch


# ---------------------------------------------------------------------------
# Main
# ---------------------------------------------------------------------------
if __name__ == "__main__":
    params = init_params()
    key = jax.random.PRNGKey(0)
    ks = jax.random.split(key, 10)

    def make_mask(k, n, length):
        lens = jax.random.randint(k, (n,), 1, length + 1)
        return (jnp.arange(length)[None, :] < lens[:, None]).astype(jnp.int32)

    graph_query_input_ids = jax.random.randint(ks[0], (B, L), 0, V, jnp.int32)
    graph_query_attention_mask = make_mask(ks[1], B, L)
    prompt_input_ids = jax.random.randint(ks[2], (B, LP), 0, V, jnp.int32)
    prompt_attention_mask = make_mask(ks[3], B, LP)
    entities_input_ids = jax.random.randint(ks[4], (NE, L), 0, V, jnp.int32)
    entities_attention_mask = make_mask(ks[5], NE, L)
    relations_input_ids = jax.random.randint(ks[6], (NR, L), 0, V, jnp.int32)
    relations_attention_mask = make_mask(ks[7], NR, L)

    # edges: (head_entity, relation, tail_entity)
    x_coo = jnp.stack([
        jax.random.randint(ks[8], (E,), 0, NE, jnp.int32),
        jax.random.randint(ks[9], (E,), 0, NR, jnp.int32),
        jax.random.randint(jax.random.fold_in(key, 99), (E,), 0, NE, jnp.int32),
    ], axis=1)                                                      # (E, 3)
    # node -> graph assignment (PyG-style `batch` vector)
    batch = (jnp.arange(NE, dtype=jnp.int32) * B) // NE             # (NE,)

    args = (graph_query_input_ids, graph_query_attention_mask,
            prompt_input_ids, prompt_attention_mask,
            entities_input_ids, entities_attention_mask,
            relations_input_ids, relations_attention_mask,
            x_coo, batch)

    fwd = jax.jit(model_forward)
    out, mean_fused_score, edge_batch = fwd(params, *args)
    jax.block_until_ready((out, mean_fused_score, edge_batch))

    # correctness check against a pure-JAX reference
    with jax.default_matmul_precision("highest"):
        ref_out, ref_mean, ref_eb = reference_forward(params, *args)

    assert out.shape == (B, LP, V)
    assert mean_fused_score.shape == (B,)
    assert edge_batch.shape == (E,)
    assert bool(jnp.all(jnp.isfinite(out)))
    assert bool(jnp.all(edge_batch == ref_eb))
    assert bool(jnp.allclose(out, ref_out, atol=1e-4, rtol=1e-3))
    assert bool(jnp.allclose(mean_fused_score, ref_mean, atol=1e-4, rtol=1e-3))
    print("KERNEL_OK")
</pallas_src>

<mosaic_0001>
module attributes {stable_mosaic.version = 11 : i64} {
  func.func @lmkbc_fused_kernel(%arg0: memref<128x1xi32, #tpu.memory_space<vmem>>, %arg1: memref<16x4xi32, #tpu.memory_space<vmem>>, %arg2: memref<14x112xf32, #tpu.memory_space<vmem>>, %arg3: memref<128x128xf32, #tpu.memory_space<vmem>>, %arg4: memref<128x384xf32, #tpu.memory_space<vmem>>, %arg5: memref<3x128xf32, #tpu.memory_space<vmem>>, %arg6: memref<128x128xf32, #tpu.memory_space<vmem>>, %arg7: memref<128x128xf32, #tpu.memory_space<vmem>>, %arg8: memref<18x128xf32, #tpu.memory_space<vmem>>) attributes {dimension_semantics = [], scalar_prefetch = 0 : i64, scratch_operands = 0 : i64, tpu.core_type = #tpu.core_type<tc>} {
    %c0 = arith.constant 0 : index
    %c0_0 = arith.constant 0 : index
    %0 = vector.load %arg0[%c0, %c0_0] : memref<128x1xi32, #tpu.memory_space<vmem>>, vector<128x1xi32>
    %1 = tpu.iota {dimensions = array<i32: 1>} : vector<128x128xi32>
    %2 = vector.broadcast %0 : vector<128x1xi32> to vector<128x128xi32>
    %3 = arith.cmpi eq, %2, %1 : vector<128x128xi32>
    %4 = arith.extui %3 : vector<128x128xi1> to vector<128x128xi32>
    %5 = arith.sitofp %4 : vector<128x128xi32> to vector<128x128xf32>
    %c0_1 = arith.constant 0 : index
    %c0_2 = arith.constant 0 : index
    %6 = vector.load %arg2[%c0_1, %c0_2] : memref<14x112xf32, #tpu.memory_space<vmem>>, vector<14x112xf32>
    %7 = vector.extract_strided_slice %5 {offsets = [0, 0], sizes = [112, 128], strides = [1, 1]} : vector<128x128xf32> to vector<112x128xf32>
    %cst = arith.constant dense<0.000000e+00> : vector<14x128xf32>
    %8 = tpu.matmul %6, %7, %cst {dimension_numbers = #tpu.dot_dimension_numbers<[1], [0], [0], [1], [0, 0, 1, 1], [], []>} : vector<14x112xf32>, vector<112x128xf32>, vector<14x128xf32> -> vector<14x128xf32>
    %cst_3 = arith.constant dense<0.000000e+00> : vector<14xf32>
    %9 = vector.multi_reduction <add>, %8, %cst_3 [1] : vector<14x128xf32> to vector<14xf32>
    %10 = vector.shape_cast %9 : vector<14xf32> to vector<14x1xf32>
    %cst_4 = arith.constant 1.000000e+00 : f32
    %11 = vector.broadcast %cst_4 : f32 to vector<14x1xf32>
    %12 = arith.maximumf %10, %11 : vector<14x1xf32>
    %13 = vector.extract_strided_slice %5 {offsets = [112, 0], sizes = [16, 128], strides = [1, 1]} : vector<128x128xf32> to vector<16x128xf32>
    %14 = tpu.concatenate %13, %8 in 0 : vector<16x128xf32>, vector<14x128xf32> -> vector<30x128xf32>
    %c0_5 = arith.constant 0 : index
    %c0_6 = arith.constant 0 : index
    %15 = vector.load %arg3[%c0_5, %c0_6] : memref<128x128xf32, #tpu.memory_space<vmem>>, vector<128x128xf32>
    %cst_7 = arith.constant dense<0.000000e+00> : vector<30x128xf32>
    %16 = tpu.matmul %14, %15, %cst_7 {dimension_numbers = #tpu.dot_dimension_numbers<[1], [0], [0], [1], [0, 0, 1, 1], [], []>} : vector<30x128xf32>, vector<128x128xf32>, vector<30x128xf32> -> vector<30x128xf32>
    %17 = vector.extract_strided_slice %16 {offsets = [0, 0], sizes = [16, 128], strides = [1, 1]} : vector<30x128xf32> to vector<16x128xf32>
    %18 = vector.extract_strided_slice %16 {offsets = [16, 0], sizes = [14, 128], strides = [1, 1]} : vector<30x128xf32> to vector<14x128xf32>
    %19 = vector.broadcast %12 : vector<14x1xf32> to vector<14x128xf32>
    %20 = arith.divf %18, %19 : vector<14x128xf32>
    %21 = vector.extract_strided_slice %20 {offsets = [12, 0], sizes = [2, 128], strides = [1, 1]} : vector<14x128xf32> to vector<2x128xf32>
    %22 = vector.extract_strided_slice %20 {offsets = [0, 0], sizes = [12, 128], strides = [1, 1]} : vector<14x128xf32> to vector<12x128xf32>
    %c0_8 = arith.constant 0 : index
    %c0_9 = arith.constant 0 : index
    %23 = vector.load %arg4[%c0_8, %c0_9] : memref<128x384xf32, #tpu.memory_space<vmem>>, vector<128x384xf32>
    %cst_10 = arith.constant dense<0.000000e+00> : vector<12x384xf32>
    %24 = tpu.matmul %22, %23, %cst_10 {dimension_numbers = #tpu.dot_dimension_numbers<[1], [0], [0], [1], [0, 0, 1, 1], [], []>} : vector<12x128xf32>, vector<128x384xf32>, vector<12x384xf32> -> vector<12x384xf32>
    %25 = vector.extract_strided_slice %24 {offsets = [0, 0], sizes = [8, 128], strides = [1, 1]} : vector<12x384xf32> to vector<8x128xf32>
    %26 = vector.extract_strided_slice %24 {offsets = [8, 128], sizes = [4, 128], strides = [1, 1]} : vector<12x384xf32> to vector<4x128xf32>
    %27 = vector.extract_strided_slice %24 {offsets = [0, 256], sizes = [8, 128], strides = [1, 1]} : vector<12x384xf32> to vector<8x128xf32>
    %28 = tpu.concatenate %25, %26, %27 in 0 : vector<8x128xf32>, vector<4x128xf32>, vector<8x128xf32> -> vector<20x128xf32>
    %c0_11 = arith.constant 0 : index
    %c0_12 = arith.constant 0 : index
    %29 = vector.load %arg1[%c0_11, %c0_12] : memref<16x4xi32, #tpu.memory_space<vmem>>, vector<16x4xi32>
    %30 = tpu.iota {dimensions = array<i32: 1>} : vector<16x20xi32>
    %31 = vector.extract_strided_slice %29 {offsets = [0, 0], sizes = [16, 1], strides = [1, 1]} : vector<16x4xi32> to vector<16x1xi32>
    %32 = vector.broadcast %31 : vector<16x1xi32> to vector<16x20xi32>
    %33 = arith.cmpi eq, %32, %30 : vector<16x20xi32>
    %34 = arith.extui %33 : vector<16x20xi1> to vector<16x20xi32>
    %35 = arith.sitofp %34 : vector<16x20xi32> to vector<16x20xf32>
    %36 = vector.extract_strided_slice %29 {offsets = [0, 1], sizes = [16, 1], strides = [1, 1]} : vector<16x4xi32> to vector<16x1xi32>
    %37 = vector.broadcast %36 : vector<16x1xi32> to vector<16x20xi32>
    %38 = arith.cmpi eq, %37, %30 : vector<16x20xi32>
    %39 = arith.extui %38 : vector<16x20xi1> to vector<16x20xi32>
    %40 = arith.sitofp %39 : vector<16x20xi32> to vector<16x20xf32>
    %41 = arith.addf %35, %40 : vector<16x20xf32>
    %42 = vector.extract_strided_slice %29 {offsets = [0, 2], sizes = [16, 1], strides = [1, 1]} : vector<16x4xi32> to vector<16x1xi32>
    %43 = vector.broadcast %42 : vector<16x1xi32> to vector<16x20xi32>
    %44 = arith.cmpi eq, %43, %30 : vector<16x20xi32>
    %45 = arith.extui %44 : vector<16x20xi1> to vector<16x20xi32>
    %46 = arith.sitofp %45 : vector<16x20xi32> to vector<16x20xf32>
    %47 = arith.addf %41, %46 : vector<16x20xf32>
    %c0_13 = arith.constant 0 : index
    %c0_14 = arith.constant 0 : index
    %48 = vector.load %arg5[%c0_13, %c0_14] : memref<3x128xf32, #tpu.memory_space<vmem>>, vector<1x128xf32>
    %cst_15 = arith.constant dense<0.000000e+00> : vector<16x128xf32>
    %49 = tpu.matmul %47, %28, %cst_15 {dimension_numbers = #tpu.dot_dimension_numbers<[1], [0], [0], [1], [0, 0, 1, 1], [], []>} : vector<16x20xf32>, vector<20x128xf32>, vector<16x128xf32> -> vector<16x128xf32>
    %50 = vector.broadcast %48 : vector<1x128xf32> to vector<16x128xf32>
    %51 = arith.addf %49, %50 : vector<16x128xf32>
    %52 = math.tanh %51 : vector<16x128xf32>
    %53 = vector.extract_strided_slice %29 {offsets = [0, 3], sizes = [16, 1], strides = [1, 1]} : vector<16x4xi32> to vector<16x1xi32>
    %cst_16 = arith.constant 0.000000e+00 : f32
    %54 = vector.broadcast %cst_16 : f32 to vector<16x128xf32>
    %c0_i32 = arith.constant 0 : i32
    %55 = vector.broadcast %c0_i32 : i32 to vector<16x1xi32>
    %56 = arith.cmpi eq, %53, %55 : vector<16x1xi32>
    %57 = arith.extui %56 : vector<16x1xi1> to vector<16x1xi32>
    %58 = arith.sitofp %57 : vector<16x1xi32> to vector<16x1xf32>
    %59 = vector.extract_strided_slice %21 {offsets = [0, 0], sizes = [1, 128], strides = [1, 1]} : vector<2x128xf32> to vector<1x128xf32>
    %60 = vector.broadcast %58 : vector<16x1xf32> to vector<16x128xf32>
    %61 = vector.broadcast %59 : vector<1x128xf32> to vector<16x128xf32>
    %62 = arith.mulf %60, %61 : vector<16x128xf32>
    %63 = arith.addf %54, %62 : vector<16x128xf32>
    %c1_i32 = arith.constant 1 : i32
    %64 = vector.broadcast %c1_i32 : i32 to vector<16x1xi32>
    %65 = arith.cmpi eq, %53, %64 : vector<16x1xi32>
    %66 = arith.extui %65 : vector<16x1xi1> to vector<16x1xi32>
    %67 = arith.sitofp %66 : vector<16x1xi32> to vector<16x1xf32>
    %68 = vector.extract_strided_slice %21 {offsets = [1, 0], sizes = [1, 128], strides = [1, 1]} : vector<2x128xf32> to vector<1x128xf32>
    %69 = vector.broadcast %67 : vector<16x1xf32> to vector<16x128xf32>
    %70 = vector.broadcast %68 : vector<1x128xf32> to vector<16x128xf32>
    %71 = arith.mulf %69, %70 : vector<16x128xf32>
    %72 = arith.addf %63, %71 : vector<16x128xf32>
    %73 = arith.mulf %52, %72 : vector<16x128xf32>
    %cst_17 = arith.constant dense<0.000000e+00> : vector<16xf32>
    %74 = vector.multi_reduction <add>, %73, %cst_17 [1] : vector<16x128xf32> to vector<16xf32>
    %75 = vector.shape_cast %74 : vector<16xf32> to vector<16x1xf32>
    %76 = arith.negf %75 : vector<16x1xf32>
    %77 = math.exp %76 : vector<16x1xf32>
    %cst_18 = arith.constant 1.000000e+00 : f32
    %78 = vector.broadcast %cst_18 : f32 to vector<16x1xf32>
    %79 = arith.addf %78, %77 : vector<16x1xf32>
    %80 = arith.divf %78, %79 : vector<16x1xf32>
    %81 = vector.broadcast %80 : vector<16x1xf32> to vector<16x128xf32>
    %82 = arith.mulf %52, %81 : vector<16x128xf32>
    %c2 = arith.constant 2 : index
    %c0_19 = arith.constant 0 : index
    %83 = vector.load %arg5[%c2, %c0_19] : memref<3x128xf32, #tpu.memory_space<vmem>>, vector<1x128xf32>
    %c0_i32_20 = arith.constant 0 : i32
    %84 = vector.broadcast %c0_i32_20 : i32 to vector<16x1xi32>
    %85 = arith.cmpi eq, %53, %84 : vector<16x1xi32>
    %86 = arith.extui %85 : vector<16x1xi1> to vector<16x1xi32>
    %87 = arith.sitofp %86 : vector<16x1xi32> to vector<16x1xf32>
    %cst_21 = arith.constant dense<0.000000e+00> : vector<1xf32>
    %88 = vector.multi_reduction <add>, %87, %cst_21 [0] : vector<16x1xf32> to vector<1xf32>
    %89 = vector.shape_cast %88 : vector<1xf32> to vector<1x1xf32>
    %cst_22 = arith.constant 1.000000e+00 : f32
    %90 = vector.broadcast %cst_22 : f32 to vector<1x1xf32>
    %91 = arith.maximumf %89, %90 : vector<1x1xf32>
    %92 = vector.broadcast %87 : vector<16x1xf32> to vector<16x128xf32>
    %93 = arith.mulf %82, %92 : vector<16x128xf32>
    %cst_23 = arith.constant dense<0.000000e+00> : vector<128xf32>
    %94 = vector.multi_reduction <add>, %93, %cst_23 [0] : vector<16x128xf32> to vector<128xf32>
    %95 = vector.shape_cast %94 : vector<128xf32> to vector<1x128xf32>
    %96 = vector.broadcast %91 : vector<1x1xf32> to vector<1x128xf32>
    %97 = arith.divf %95, %96 : vector<1x128xf32>
    %98 = arith.mulf %80, %87 : vector<16x1xf32>
    %cst_24 = arith.constant dense<0.000000e+00> : vector<1xf32>
    %99 = vector.multi_reduction <add>, %98, %cst_24 [0] : vector<16x1xf32> to vector<1xf32>
    %100 = vector.shape_cast %99 : vector<1xf32> to vector<1x1xf32>
    %101 = arith.divf %100, %91 : vector<1x1xf32>
    %cst_25 = arith.constant 1.000000e+00 : f32
    %102 = vector.broadcast %cst_25 : f32 to vector<1x128xf32>
    %103 = arith.subf %102, %83 : vector<1x128xf32>
    %104 = arith.mulf %97, %103 : vector<1x128xf32>
    %105 = vector.broadcast %101 : vector<1x1xf32> to vector<1x128xf32>
    %106 = arith.mulf %105, %83 : vector<1x128xf32>
    %107 = arith.addf %104, %106 : vector<1x128xf32>
    %c1_i32_26 = arith.constant 1 : i32
    %108 = vector.broadcast %c1_i32_26 : i32 to vector<16x1xi32>
    %109 = arith.cmpi eq, %53, %108 : vector<16x1xi32>
    %110 = arith.extui %109 : vector<16x1xi1> to vector<16x1xi32>
    %111 = arith.sitofp %110 : vector<16x1xi32> to vector<16x1xf32>
    %cst_27 = arith.constant dense<0.000000e+00> : vector<1xf32>
    %112 = vector.multi_reduction <add>, %111, %cst_27 [0] : vector<16x1xf32> to vector<1xf32>
    %113 = vector.shape_cast %112 : vector<1xf32> to vector<1x1xf32>
    %cst_28 = arith.constant 1.000000e+00 : f32
    %114 = vector.broadcast %cst_28 : f32 to vector<1x1xf32>
    %115 = arith.maximumf %113, %114 : vector<1x1xf32>
    %116 = vector.broadcast %111 : vector<16x1xf32> to vector<16x128xf32>
    %117 = arith.mulf %82, %116 : vector<16x128xf32>
    %cst_29 = arith.constant dense<0.000000e+00> : vector<128xf32>
    %118 = vector.multi_reduction <add>, %117, %cst_29 [0] : vector<16x128xf32> to vector<128xf32>
    %119 = vector.shape_cast %118 : vector<128xf32> to vector<1x128xf32>
    %120 = vector.broadcast %115 : vector<1x1xf32> to vector<1x128xf32>
    %121 = arith.divf %119, %120 : vector<1x128xf32>
    %122 = arith.mulf %80, %111 : vector<16x1xf32>
    %cst_30 = arith.constant dense<0.000000e+00> : vector<1xf32>
    %123 = vector.multi_reduction <add>, %122, %cst_30 [0] : vector<16x1xf32> to vector<1xf32>
    %124 = vector.shape_cast %123 : vector<1xf32> to vector<1x1xf32>
    %125 = arith.divf %124, %115 : vector<1x1xf32>
    %cst_31 = arith.constant 1.000000e+00 : f32
    %126 = vector.broadcast %cst_31 : f32 to vector<1x128xf32>
    %127 = arith.subf %126, %83 : vector<1x128xf32>
    %128 = arith.mulf %121, %127 : vector<1x128xf32>
    %129 = vector.broadcast %125 : vector<1x1xf32> to vector<1x128xf32>
    %130 = arith.mulf %129, %83 : vector<1x128xf32>
    %131 = arith.addf %128, %130 : vector<1x128xf32>
    %132 = vector.shape_cast %97 : vector<1x128xf32> to vector<1x128xf32>
    %133 = vector.broadcast %132 : vector<1x128xf32> to vector<8x128xf32>
    %134 = vector.shape_cast %121 : vector<1x128xf32> to vector<1x128xf32>
    %135 = vector.broadcast %134 : vector<1x128xf32> to vector<8x128xf32>
    %136 = tpu.concatenate %133, %135 in 0 : vector<8x128xf32>, vector<8x128xf32> -> vector<16x128xf32>
    %137 = arith.addf %17, %136 : vector<16x128xf32>
    %c1 = arith.constant 1 : index
    %c0_32 = arith.constant 0 : index
    %138 = vector.load %arg5[%c1, %c0_32] : memref<3x128xf32, #tpu.memory_space<vmem>>, vector<1x128xf32>
    %c0_33 = arith.constant 0 : index
    %c0_34 = arith.constant 0 : index
    %139 = vector.load %arg6[%c0_33, %c0_34] : memref<128x128xf32, #tpu.memory_space<vmem>>, vector<128x128xf32>
    %cst_35 = arith.constant dense<0.000000e+00> : vector<16x128xf32>
    %140 = tpu.matmul %137, %139, %cst_35 {dimension_numbers = #tpu.dot_dimension_numbers<[1], [0], [0], [1], [0, 0, 1, 1], [], []>} : vector<16x128xf32>, vector<128x128xf32>, vector<16x128xf32> -> vector<16x128xf32>
    %141 = vector.broadcast %138 : vector<1x128xf32> to vector<16x128xf32>
    %142 = arith.addf %140, %141 : vector<16x128xf32>
    %143 = arith.mulf %142, %142 : vector<16x128xf32>
    %144 = arith.mulf %142, %143 : vector<16x128xf32>
    %cst_36 = arith.constant 4.471500e-02 : f32
    %145 = vector.broadcast %cst_36 : f32 to vector<16x128xf32>
    %146 = arith.mulf %145, %144 : vector<16x128xf32>
    %147 = arith.addf %142, %146 : vector<16x128xf32>
    %cst_37 = arith.constant 0.797884583 : f32
    %148 = vector.broadcast %cst_37 : f32 to vector<16x128xf32>
    %149 = arith.mulf %148, %147 : vector<16x128xf32>
    %150 = math.tanh %149 : vector<16x128xf32>
    %cst_38 = arith.constant 1.000000e+00 : f32
    %151 = vector.broadcast %cst_38 : f32 to vector<16x128xf32>
    %152 = arith.addf %151, %150 : vector<16x128xf32>
    %cst_39 = arith.constant 5.000000e-01 : f32
    %153 = vector.broadcast %cst_39 : f32 to vector<16x128xf32>
    %154 = arith.mulf %153, %152 : vector<16x128xf32>
    %155 = arith.mulf %142, %154 : vector<16x128xf32>
    %c0_40 = arith.constant 0 : index
    %c0_41 = arith.constant 0 : index
    %156 = vector.load %arg7[%c0_40, %c0_41] : memref<128x128xf32, #tpu.memory_space<vmem>>, vector<128x128xf32>
    %cst_42 = arith.constant dense<0.000000e+00> : vector<16x128xf32>
    %157 = tpu.matmul %155, %156, %cst_42 {dimension_numbers = #tpu.dot_dimension_numbers<[1], [0], [0], [1], [0, 0, 1, 1], [], []>} : vector<16x128xf32>, vector<128x128xf32>, vector<16x128xf32> -> vector<16x128xf32>
    %158 = tpu.concatenate %157, %107, %131 in 0 : vector<16x128xf32>, vector<1x128xf32>, vector<1x128xf32> -> vector<18x128xf32>
    %c0_43 = arith.constant 0 : index
    %c0_44 = arith.constant 0 : index
    %159 = vector.load %arg8[%c0_43, %c0_44] : memref<18x128xf32, #tpu.memory_space<vmem>>, vector<18x128xf32>
    tpu.vector_store %arg8[%c0_43, %c0_44], %158 {strides = array<i32>} : memref<18x128xf32, #tpu.memory_space<vmem>>, vector<18x128xf32>,
    return
  }
}

</mosaic_0001>

<llo_original>
// kernel: model_forward.1
$region0: #{model_forward.1}
  #allocation0 [shape = 'u32[]', space=smem, size = 0x4, offset = 0x4, fixed_abs, tag = 'smem constant byte address 0x4 - core index']
  #allocation1 [shape = 'u32[144,128]{1,0:T(1,128)}', space=vmem, size = 0x12000, scoped, tag = 'internal scratch']
  %s0 = inlined_call_operand.vmem [shape: s32[128,1], index: 0, kind: input, shape index: {}]
  %s1 = inlined_call_operand.vmem [shape: s32[16,4], index: 1, kind: input, shape index: {}]
  %s2 = inlined_call_operand.vmem [shape: f32[14,112], index: 2, kind: input, shape index: {}]
  %s3 = inlined_call_operand.vmem [shape: f32[128,128], index: 3, kind: input, shape index: {}]
  %s4 = inlined_call_operand.vmem [shape: f32[128,384], index: 4, kind: input, shape index: {}]
  %s5 = inlined_call_operand.vmem [shape: f32[3,128], index: 5, kind: input, shape index: {}]
  %s6 = inlined_call_operand.vmem [shape: f32[128,128], index: 6, kind: input, shape index: {}]
  %s7 = inlined_call_operand.vmem [shape: f32[128,128], index: 7, kind: input, shape index: {}]
  %s8 = inlined_call_operand.vmem [shape: f32[18,128], index: 8, kind: output, shape index: {}]
  %s9 = sld [smem:[#allocation0]]
  $region42: #{model_forward.1} parent=0
    _
  %s11 = ssub.s32 1, %s9
  %s12 = scalar_select 0, %s11, %s9
  // Predicated region
  $region2: #{model_forward.1} parent=0 // pred_check
    _
  $region3: #{model_forward.1} parent=0 // pred_check_branch
    %14 = sbr.rel (0) target = $region5
  $region4: #{model_forward.1} parent=0 // pred_region
    _
  $region5: #{model_forward.1} parent=0 // pred_fallthru
    _
  // Predicated region
  $region6: #{model_forward.1} parent=0 // pred_check
    _
  $region7: #{model_forward.1} parent=0 // pred_check_branch
    %16 = sbr.rel (0) target = $region9
  $region8: #{model_forward.1} parent=0 // pred_region
    _
  $region9: #{model_forward.1} parent=0 // pred_fallthru
    _
  // Predicated region
  $region10: #{model_forward.1} parent=0 // pred_check
    _
  $region11: #{model_forward.1} parent=0 // pred_check_branch
    %18 = sbr.rel (0) target = $region13
  $region12: #{model_forward.1} parent=0 // pred_region
    _
  $region13: #{model_forward.1} parent=0 // pred_fallthru
    _
  // Predicated region
  $region14: #{model_forward.1} parent=0 // pred_check
    _
  $region15: #{model_forward.1} parent=0 // pred_check_branch
    %20 = sbr.rel (0) target = $region17
  $region16: #{model_forward.1} parent=0 // pred_region
    _
  $region17: #{model_forward.1} parent=0 // pred_fallthru
    _
  // Predicated region
  $region18: #{model_forward.1} parent=0 // pred_check
    _
  $region19: #{model_forward.1} parent=0 // pred_check_branch
    %22 = sbr.rel (0) target = $region21
  $region20: #{model_forward.1} parent=0 // pred_region
    _
  $region21: #{model_forward.1} parent=0 // pred_fallthru
    _
  // Predicated region
  $region22: #{model_forward.1} parent=0 // pred_check
    _
  $region23: #{model_forward.1} parent=0 // pred_check_branch
    %24 = sbr.rel (0) target = $region25
  $region24: #{model_forward.1} parent=0 // pred_region
    _
  $region25: #{model_forward.1} parent=0 // pred_fallthru
    _
  // Predicated region
  $region26: #{model_forward.1} parent=0 // pred_check
    _
  $region27: #{model_forward.1} parent=0 // pred_check_branch
    %26 = sbr.rel (0) target = $region29
  $region28: #{model_forward.1} parent=0 // pred_region
    _
  $region29: #{model_forward.1} parent=0 // pred_fallthru
    _
  // Predicated region
  $region30: #{model_forward.1} parent=0 // pred_check
    _
  $region31: #{model_forward.1} parent=0 // pred_check_branch
    %28 = sbr.rel (0) target = $region33
  $region32: #{model_forward.1} parent=0 // pred_region
    _
  $region33: #{model_forward.1} parent=0 // pred_fallthru
    _
  %v29 = vld [vmem:[%s0] sm:$0xff]
  %v30 = vld [vmem:[%s0 + $0x8] sm:$0xff]
  %v31 = vld [vmem:[%s0 + $0x10] sm:$0xff]
  %v32 = vld [vmem:[%s0 + $0x18] sm:$0xff]
  %v33 = vld [vmem:[%s0 + $0x20] sm:$0xff]
  %v34 = vld [vmem:[%s0 + $0x28] sm:$0xff]
  %v35 = vld [vmem:[%s0 + $0x30] sm:$0xff]
  %v36 = vld [vmem:[%s0 + $0x38] sm:$0xff]
  %v37 = vld [vmem:[%s0 + $0x40] sm:$0xff]
  %v38 = vld [vmem:[%s0 + $0x48] sm:$0xff]
  %v39 = vld [vmem:[%s0 + $0x50] sm:$0xff]
  %v40 = vld [vmem:[%s0 + $0x58] sm:$0xff]
  %v41 = vld [vmem:[%s0 + $0x60] sm:$0xff]
  %v42 = vld [vmem:[%s0 + $0x68] sm:$0xff]
  %v43 = vld [vmem:[%s0 + $0x70] sm:$0xff]
  %v44 = vld [vmem:[%s0 + $0x78] sm:$0xff]
  %v45 = vlaneseq
  %v46 = vand.u32 %v45, 127
  %47 = vset.pattern.permute.xlu0 0
  %48 = vperm.xlu0 %47, %v29
  %v49 = vpop.permute.xlu0 %48
  %50 = vset.pattern.permute.xlu0 0
  %51 = vperm.xlu0 %50, %v30
  %v52 = vpop.permute.xlu0 %51
  %53 = vset.pattern.permute.xlu0 0
  %54 = vperm.xlu0 %53, %v31
  %v55 = vpop.permute.xlu0 %54
  %56 = vset.pattern.permute.xlu0 0
  %57 = vperm.xlu0 %56, %v32
  %v58 = vpop.permute.xlu0 %57
  %59 = vset.pattern.permute.xlu0 0
  %60 = vperm.xlu0 %59, %v33
  %v61 = vpop.permute.xlu0 %60
  %62 = vset.pattern.permute.xlu0 0
  %63 = vperm.xlu0 %62, %v34
  %v64 = vpop.permute.xlu0 %63
  %65 = vset.pattern.permute.xlu0 0
  %66 = vperm.xlu0 %65, %v35
  %v67 = vpop.permute.xlu0 %66
  %68 = vset.pattern.permute.xlu0 0
  %69 = vperm.xlu0 %68, %v36
  %v70 = vpop.permute.xlu0 %69
  %71 = vset.pattern.permute.xlu0 0
  %72 = vperm.xlu0 %71, %v37
  %v73 = vpop.permute.xlu0 %72
  %74 = vset.pattern.permute.xlu0 0
  %75 = vperm.xlu0 %74, %v38
  %v76 = vpop.permute.xlu0 %75
  %77 = vset.pattern.permute.xlu0 0
  %78 = vperm.xlu0 %77, %v39
  %v79 = vpop.permute.xlu0 %78
  %80 = vset.pattern.permute.xlu0 0
  %81 = vperm.xlu0 %80, %v40
  %v82 = vpop.permute.xlu0 %81
  %83 = vset.pattern.permute.xlu0 0
  %84 = vperm.xlu0 %83, %v41
  %v85 = vpop.permute.xlu0 %84
  %86 = vset.pattern.permute.xlu0 0
  %87 = vperm.xlu0 %86, %v42
  %v88 = vpop.permute.xlu0 %87
  %89 = vset.pattern.permute.xlu0 0
  %90 = vperm.xlu0 %89, %v43
  %v91 = vpop.permute.xlu0 %90
  %92 = vset.pattern.permute.xlu0 0
  %93 = vperm.xlu0 %92, %v44
  %v94 = vpop.permute.xlu0 %93
  %vm95 = vcmp.eq.s32.totalorder %v49, %v46
  %vm96 = vcmp.eq.s32.totalorder %v52, %v46
  %vm97 = vcmp.eq.s32.totalorder %v55, %v46
  %vm98 = vcmp.eq.s32.totalorder %v58, %v46
  %vm99 = vcmp.eq.s32.totalorder %v61, %v46
  %vm100 = vcmp.eq.s32.totalorder %v64, %v46
  %vm101 = vcmp.eq.s32.totalorder %v67, %v46
  %vm102 = vcmp.eq.s32.totalorder %v70, %v46
  %vm103 = vcmp.eq.s32.totalorder %v73, %v46
  %vm104 = vcmp.eq.s32.totalorder %v76, %v46
  %vm105 = vcmp.eq.s32.totalorder %v79, %v46
  %vm106 = vcmp.eq.s32.totalorder %v82, %v46
  %vm107 = vcmp.eq.s32.totalorder %v85, %v46
  %vm108 = vcmp.eq.s32.totalorder %v88, %v46
  %vm109 = vcmp.eq.s32.totalorder %v91, %v46
  %vm110 = vcmp.eq.s32.totalorder %v94, %v46
  %v111 = vsel %vm95, 1, 0
  %v112 = vsel %vm96, 1, 0
  %v113 = vsel %vm97, 1, 0
  %v114 = vsel %vm98, 1, 0
  %v115 = vsel %vm99, 1, 0
  %v116 = vsel %vm100, 1, 0
  %v117 = vsel %vm101, 1, 0
  %v118 = vsel %vm102, 1, 0
  %v119 = vsel %vm103, 1, 0
  %v120 = vsel %vm104, 1, 0
  %v121 = vsel %vm105, 1, 0
  %v122 = vsel %vm106, 1, 0
  %v123 = vsel %vm107, 1, 0
  %v124 = vsel %vm108, 1, 0
  %v125 = vsel %vm109, 1, 0
  %v126 = vsel %vm110, 1, 0
  %v127 = vcvt.s32.f32 %v111
  %v128 = vcvt.s32.f32 %v112
  %v129 = vcvt.s32.f32 %v113
  %v130 = vcvt.s32.f32 %v114
  %v131 = vcvt.s32.f32 %v115
  %v132 = vcvt.s32.f32 %v116
  %v133 = vcvt.s32.f32 %v117
  %v134 = vcvt.s32.f32 %v118
  %v135 = vcvt.s32.f32 %v119
  %v136 = vcvt.s32.f32 %v120
  %v137 = vcvt.s32.f32 %v121
  %v138 = vcvt.s32.f32 %v122
  %v139 = vcvt.s32.f32 %v123
  %v140 = vcvt.s32.f32 %v124
  %v141 = vcvt.s32.f32 %v125
  %v142 = vcvt.s32.f32 %v126
  %v143 = vld [vmem:[%s2] sm:$0xff]
  %v144 = vld [vmem:[%s2 + $0x8] sm:$0x3f]
  %vm145 = vcmask 916480
  %v147 = vsel %vm145, %v143, 0
  %v150 = vsel %vm145, %v144, 0
  %152 = vmatprep.subr.mxu0 0.0
  %153 = vmatpush1.msra.mxu0 %v127
  %154 = vmatprep.subr.mxu0 0.0
  %155 = vmatpush1.msra.mxu0 %v128
  %156 = vmatprep.subr.mxu0 0.0
  %157 = vmatpush1.msra.mxu0 %v129
  %158 = vmatprep.subr.mxu0 0.0
  %159 = vmatpush1.msra.mxu0 %v130
  %160 = vmatprep.subr.mxu0 0.0
  %161 = vmatpush1.msra.mxu0 %v131
  %162 = vmatprep.subr.mxu0 0.0
  %163 = vmatpush1.msra.mxu0 %v132
  %164 = vmatprep.subr.mxu0 0.0
  %165 = vmatpush1.msra.mxu0 %v133
  %166 = vmatprep.subr.mxu0 0.0
  %167 = vmatpush1.msra.mxu0 %v134
  %168 = vmatprep.subr.mxu0 0.0
  %169 = vmatpush1.msra.mxu0 %v135
  %170 = vmatprep.subr.mxu0 0.0
  %171 = vmatpush1.msra.mxu0 %v136
  %172 = vmatprep.subr.mxu0 0.0
  %173 = vmatpush1.msra.mxu0 %v137
  %174 = vmatprep.subr.mxu0 0.0
  %175 = vmatpush1.msra.mxu0 %v138
  %176 = vmatprep.subr.mxu0 0.0
  %177 = vmatpush1.msra.mxu0 %v139
  %178 = vmatprep.subr.mxu0 0.0
  %179 = vmatpush1.msra.mxu0 %v140
  %180 = vmatprep.subr.mxu0 0.0
  %181 = vmatpush1.msra.mxu0 0.0
  %182 = vmatprep.subr.mxu0 0.0
  %183 = vmatpush1.msra.mxu0 0.0
  %184 = vmatprep.subr.mxu0 0.0
  %185 = vmatpush1.msra.mxu0 0.0
  %186 = vmatprep.subr.mxu0 0.0
  %187 = vmatpush1.msra.mxu0 0.0
  %188 = vmatprep.subr.mxu0 0.0
  %189 = vmatpush1.msra.mxu0 0.0
  %190 = vmatprep.subr.mxu0 0.0
  %191 = vmatpush1.msra.mxu0 0.0
  %192 = vmatprep.subr.mxu0 0.0
  %193 = vmatpush1.msra.mxu0 0.0
  %194 = vmatprep.subr.mxu0 0.0
  %195 = vmatpush1.msra.mxu0 0.0
  %196 = vmatprep.subr.mxu0 0.0
  %197 = vmatpush1.msra.mxu0 0.0
  %198 = vmatprep.subr.mxu0 0.0
  %199 = vmatpush1.msra.mxu0 0.0
  %200 = vmatprep.subr.mxu0 0.0
  %201 = vmatpush1.msra.mxu0 0.0
  %202 = vmatprep.subr.mxu0 0.0
  %203 = vmatpush1.msra.mxu0 0.0
  %204 = vmatprep.subr.mxu0 0.0
  %205 = vmatpush1.msra.mxu0 0.0
  %206 = vmatprep.subr.mxu0 0.0
  %207 = vmatpush1.msra.mxu0 0.0
  %208 = vmatprep.subr.mxu0 0.0
  %209 = vmatpush1.msra.mxu0 0.0
  %210 = vmatprep.subr.mxu0 0.0
  %211 = vmatpush1.msra.mxu0 0.0
  %212 = vmatprep.subr.mxu0 0.0
  %213 = vmatpush1.msra.mxu0 0.0
  %214 = vmatprep.subr.mxu0 0.0
  %215 = vmatpush1.msra.mxu0 0.0
  %216 = vmatprep.mubr.f32.mxu0 0.0
  %217 = vmatmul.mubr.f32.gmra.mrb[0].mxu0 %v147
  %v218 = vpop.f32.mrb[0].mxu0
  %v219 = vadd.f32 0.0, %v218
  %v220 = vpop.f32.mrb[0].mxu0
  %221 = vmatprep.mubr.f32.mxu0 0.0
  %222 = vmatmul.mubr.f32.gmra.mrb[0].mxu0 %v150
  %v223 = vpop.f32.mrb[0].mxu0
  %v224 = vadd.f32 0.0, %v223
  %v225 = vpop.f32.mrb[0].mxu0
  %226 = vdwg.mxu0
  %227 = vadd.xlane.f32.xlu0 %v219
  %v228 = vpop.xlane.xlu0 %227
  %vm229 = vcmask 1045504
  %v230 = vsel %vm229, %v224, 0.0
  %231 = vadd.xlane.f32.xlu0 %v230
  %v232 = vpop.xlane.xlu0 %231
  %v233 = vmax.f32 %v228, 1.0
  %v234 = vmax.f32 %v232, 1.0
  %v235 = vld [vmem:[%s3] sm:$0xff]
  %v236 = vld [vmem:[%s3 + $0x8] sm:$0xff]
  %v237 = vld [vmem:[%s3 + $0x10] sm:$0xff]
  %v238 = vld [vmem:[%s3 + $0x18] sm:$0xff]
  %v239 = vld [vmem:[%s3 + $0x20] sm:$0xff]
  %v240 = vld [vmem:[%s3 + $0x28] sm:$0xff]
  %v241 = vld [vmem:[%s3 + $0x30] sm:$0xff]
  %v242 = vld [vmem:[%s3 + $0x38] sm:$0xff]
  %v243 = vld [vmem:[%s3 + $0x40] sm:$0xff]
  %v244 = vld [vmem:[%s3 + $0x48] sm:$0xff]
  %v245 = vld [vmem:[%s3 + $0x50] sm:$0xff]
  %v246 = vld [vmem:[%s3 + $0x58] sm:$0xff]
  %v247 = vld [vmem:[%s3 + $0x60] sm:$0xff]
  %v248 = vld [vmem:[%s3 + $0x68] sm:$0xff]
  %v249 = vld [vmem:[%s3 + $0x70] sm:$0xff]
  %v250 = vld [vmem:[%s3 + $0x78] sm:$0xff]
  %251 = vmatprep.subr.mxu0 0.0
  %252 = vmatpush1.msra.mxu0 %v235
  %253 = vmatprep.subr.mxu0 0.0
  %254 = vmatpush1.msra.mxu0 %v236
  %255 = vmatprep.subr.mxu0 0.0
  %256 = vmatpush1.msra.mxu0 %v237
  %257 = vmatprep.subr.mxu0 0.0
  %258 = vmatpush1.msra.mxu0 %v238
  %259 = vmatprep.subr.mxu0 0.0
  %260 = vmatpush1.msra.mxu0 %v239
  %261 = vmatprep.subr.mxu0 0.0
  %262 = vmatpush1.msra.mxu0 %v240
  %263 = vmatprep.subr.mxu0 0.0
  %264 = vmatpush1.msra.mxu0 %v241
  %265 = vmatprep.subr.mxu0 0.0
  %266 = vmatpush1.msra.mxu0 %v242
  %267 = vmatprep.subr.mxu0 0.0
  %268 = vmatpush1.msra.mxu0 %v243
  %269 = vmatprep.subr.mxu0 0.0
  %270 = vmatpush1.msra.mxu0 %v244
  %271 = vmatprep.subr.mxu0 0.0
  %272 = vmatpush1.msra.mxu0 %v245
  %273 = vmatprep.subr.mxu0 0.0
  %274 = vmatpush1.msra.mxu0 %v246
  %275 = vmatprep.subr.mxu0 0.0
  %276 = vmatpush1.msra.mxu0 %v247
  %277 = vmatprep.subr.mxu0 0.0
  %278 = vmatpush1.msra.mxu0 %v248
  %279 = vmatprep.subr.mxu0 0.0
  %280 = vmatpush1.msra.mxu0 %v249
  %281 = vmatprep.subr.mxu0 0.0
  %282 = vmatpush1.msra.mxu0 %v250
  %283 = vmatprep.subr.mxu0 0.0
  %284 = vmatpush1.msra.mxu0 0.0
  %285 = vmatprep.subr.mxu0 0.0
  %286 = vmatpush1.msra.mxu0 0.0
  %287 = vmatprep.subr.mxu0 0.0
  %288 = vmatpush1.msra.mxu0 0.0
  %289 = vmatprep.subr.mxu0 0.0
  %290 = vmatpush1.msra.mxu0 0.0
  %291 = vmatprep.subr.mxu0 0.0
  %292 = vmatpush1.msra.mxu0 0.0
  %293 = vmatprep.subr.mxu0 0.0
  %294 = vmatpush1.msra.mxu0 0.0
  %295 = vmatprep.subr.mxu0 0.0
  %296 = vmatpush1.msra.mxu0 0.0
  %297 = vmatprep.subr.mxu0 0.0
  %298 = vmatpush1.msra.mxu0 0.0
  %299 = vmatprep.subr.mxu0 0.0
  %300 = vmatpush1.msra.mxu0 0.0
  %301 = vmatprep.subr.mxu0 0.0
  %302 = vmatpush1.msra.mxu0 0.0
  %303 = vmatprep.subr.mxu0 0.0
  %304 = vmatpush1.msra.mxu0 0.0
  %305 = vmatprep.subr.mxu0 0.0
  %306 = vmatpush1.msra.mxu0 0.0
  %307 = vmatprep.subr.mxu0 0.0
  %308 = vmatpush1.msra.mxu0 0.0
  %309 = vmatprep.subr.mxu0 0.0
  %310 = vmatpush1.msra.mxu0 0.0
  %311 = vmatprep.subr.mxu0 0.0
  %312 = vmatpush1.msra.mxu0 0.0
  %313 = vmatprep.subr.mxu0 0.0
  %314 = vmatpush1.msra.mxu0 0.0
  %315 = vmatprep.mubr.f32.mxu0 0.0
  %316 = vmatmul.mubr.f32.gmra.mrb[0].mxu0 %v141
  %v317 = vpop.f32.mrb[0].mxu0
  %v318 = vadd.f32 0.0, %v317
  %v319 = vpop.f32.mrb[0].mxu0
  %320 = vmatprep.mubr.f32.mxu0 0.0
  %321 = vmatmul.mubr.f32.gmra.mrb[0].mxu0 %v142
  %v322 = vpop.f32.mrb[0].mxu0
  %v323 = vadd.f32 0.0, %v322
  %v324 = vpop.f32.mrb[0].mxu0
  %325 = vmatprep.mubr.f32.mxu0 0.0
  %326 = vmatmul.mubr.f32.gmra.mrb[0].mxu0 %v219
  %v327 = vpop.f32.mrb[0].mxu0
  %v328 = vadd.f32 0.0, %v327
  %v329 = vpop.f32.mrb[0].mxu0
  %330 = vmatprep.mubr.f32.mxu0 0.0
  %331 = vmatmul.mubr.f32.gmra.mrb[0].mxu0 %v224
  %v332 = vpop.f32.mrb[0].mxu0
  %v333 = vadd.f32 0.0, %v332
  %v334 = vpop.f32.mrb[0].mxu0
  %335 = vdwg.mxu0
  %v336 = vrcp.pop %v233
  %v337 = vmul.f32 %v328, %v336
  %v338 = vrcp.pop %v234
  %v339 = vmul.f32 %v333, %v338
  %v340 = vld [vmem:[%s4] sm:$0xff]
  %v341 = vld [vmem:[%s4 + $0x8] sm:$0xff]
  %v342 = vld [vmem:[%s4 + $0x10] sm:$0xff]
  %v343 = vld [vmem:[%s4 + $0x18] sm:$0xff]
  %v344 = vld [vmem:[%s4 + $0x20] sm:$0xff]
  %v345 = vld [vmem:[%s4 + $0x28] sm:$0xff]
  %v346 = vld [vmem:[%s4 + $0x30] sm:$0xff]
  %v347 = vld [vmem:[%s4 + $0x38] sm:$0xff]
  %v348 = vld [vmem:[%s4 + $0x40] sm:$0xff]
  %v349 = vld [vmem:[%s4 + $0x48] sm:$0xff]
  %v350 = vld [vmem:[%s4 + $0x50] sm:$0xff]
  %v351 = vld [vmem:[%s4 + $0x58] sm:$0xff]
  %v352 = vld [vmem:[%s4 + $0x60] sm:$0xff]
  %v353 = vld [vmem:[%s4 + $0x68] sm:$0xff]
  %v354 = vld [vmem:[%s4 + $0x70] sm:$0xff]
  %v355 = vld [vmem:[%s4 + $0x78] sm:$0xff]
  %v356 = vld [vmem:[%s4 + $0x80] sm:$0xff]
  %v357 = vld [vmem:[%s4 + $0x88] sm:$0xff]
  %v358 = vld [vmem:[%s4 + $0x90] sm:$0xff]
  %v359 = vld [vmem:[%s4 + $0x98] sm:$0xff]
  %v360 = vld [vmem:[%s4 + $0xa0] sm:$0xff]
  %v361 = vld [vmem:[%s4 + $0xa8] sm:$0xff]
  %v362 = vld [vmem:[%s4 + $0xb0] sm:$0xff]
  %v363 = vld [vmem:[%s4 + $0xb8] sm:$0xff]
  %v364 = vld [vmem:[%s4 + $0xc0] sm:$0xff]
  %v365 = vld [vmem:[%s4 + $0xc8] sm:$0xff]
  %v366 = vld [vmem:[%s4 + $0xd0] sm:$0xff]
  %v367 = vld [vmem:[%s4 + $0xd8] sm:$0xff]
  %v368 = vld [vmem:[%s4 + $0xe0] sm:$0xff]
  %v369 = vld [vmem:[%s4 + $0xe8] sm:$0xff]
  %v370 = vld [vmem:[%s4 + $0xf0] sm:$0xff]
  %v371 = vld [vmem:[%s4 + $0xf8] sm:$0xff]
  %v372 = vld [vmem:[%s4 + $0x100] sm:$0xff]
  %v373 = vld [vmem:[%s4 + $0x108] sm:$0xff]
  %v374 = vld [vmem:[%s4 + $0x110] sm:$0xff]
  %v375 = vld [vmem:[%s4 + $0x118] sm:$0xff]
  %v376 = vld [vmem:[%s4 + $0x120] sm:$0xff]
  %v377 = vld [vmem:[%s4 + $0x128] sm:$0xff]
  %v378 = vld [vmem:[%s4 + $0x130] sm:$0xff]
  %v379 = vld [vmem:[%s4 + $0x138] sm:$0xff]
  %v380 = vld [vmem:[%s4 + $0x140] sm:$0xff]
  %v381 = vld [vmem:[%s4 + $0x148] sm:$0xff]
  %v382 = vld [vmem:[%s4 + $0x150] sm:$0xff]
  %v383 = vld [vmem:[%s4 + $0x158] sm:$0xff]
  %v384 = vld [vmem:[%s4 + $0x160] sm:$0xff]
  %v385 = vld [vmem:[%s4 + $0x168] sm:$0xff]
  %v386 = vld [vmem:[%s4 + $0x170] sm:$0xff]
  %v387 = vld [vmem:[%s4 + $0x178] sm:$0xff]
  %388 = vmatprep.subr.mxu0 %v341
  %389 = vmatpush1.msra.mxu0 %v340
  %390 = vmatprep.subr.mxu0 %v344
  %391 = vmatpush1.msra.mxu0 %v343
  %392 = vmatprep.subr.mxu0 %v347
  %393 = vmatpush1.msra.mxu0 %v346
  %394 = vmatprep.subr.mxu0 %v350
  %395 = vmatpush1.msra.mxu0 %v349
  %396 = vmatprep.subr.mxu0 %v353
  %397 = vmatpush1.msra.mxu0 %v352
  %398 = vmatprep.subr.mxu0 %v356
  %399 = vmatpush1.msra.mxu0 %v355
  %400 = vmatprep.subr.mxu0 %v359
  %401 = vmatpush1.msra.mxu0 %v358
  %402 = vmatprep.subr.mxu0 %v362
  %403 = vmatpush1.msra.mxu0 %v361
  %404 = vmatprep.subr.mxu0 %v365
  %405 = vmatpush1.msra.mxu0 %v364
  %406 = vmatprep.subr.mxu0 %v368
  %407 = vmatpush1.msra.mxu0 %v367
  %408 = vmatprep.subr.mxu0 %v371
  %409 = vmatpush1.msra.mxu0 %v370
  %410 = vmatprep.subr.mxu0 %v374
  %411 = vmatpush1.msra.mxu0 %v373
  %412 = vmatprep.subr.mxu0 %v377
  %413 = vmatpush1.msra.mxu0 %v376
  %414 = vmatprep.subr.mxu0 %v380
  %415 = vmatpush1.msra.mxu0 %v379
  %416 = vmatprep.subr.mxu0 %v383
  %417 = vmatpush1.msra.mxu0 %v382
  %418 = vmatprep.subr.mxu0 %v386
  %419 = vmatpush1.msra.mxu0 %v385
  %420 = vmatprep.subr.mxu0 0.0
  %421 = vmatpush1.msra.mxu0 0.0
  %422 = vmatprep.subr.mxu0 0.0
  %423 = vmatpush1.msra.mxu0 0.0
  %424 = vmatprep.subr.mxu0 0.0
  %425 = vmatpush1.msra.mxu0 0.0
  %426 = vmatprep.subr.mxu0 0.0
  %427 = vmatpush1.msra.mxu0 0.0
  %428 = vmatprep.subr.mxu0 0.0
  %429 = vmatpush1.msra.mxu0 0.0
  %430 = vmatprep.subr.mxu0 0.0
  %431 = vmatpush1.msra.mxu0 0.0
  %432 = vmatprep.subr.mxu0 0.0
  %433 = vmatpush1.msra.mxu0 0.0
  %434 = vmatprep.subr.mxu0 0.0
  %435 = vmatpush1.msra.mxu0 0.0
  %436 = vmatprep.subr.mxu0 0.0
  %437 = vmatpush1.msra.mxu0 0.0
  %438 = vmatprep.subr.mxu0 0.0
  %439 = vmatpush1.msra.mxu0 0.0
  %440 = vmatprep.subr.mxu0 0.0
  %441 = vmatpush1.msra.mxu0 0.0
  %442 = vmatprep.subr.mxu0 0.0
  %443 = vmatpush1.msra.mxu0 0.0
  %444 = vmatprep.subr.mxu0 0.0
  %445 = vmatpush1.msra.mxu0 0.0
  %446 = vmatprep.subr.mxu0 0.0
  %447 = vmatpush1.msra.mxu0 0.0
  %448 = vmatprep.subr.mxu0 0.0
  %449 = vmatpush1.msra.mxu0 0.0
  %450 = vmatprep.subr.mxu0 0.0
  %451 = vmatpush1.msra.mxu0 0.0
  %452 = vmatprep.mubr.f32.mxu0 0.0
  %453 = vmatmul.mubr.f32.gmra.mrb[0].mxu0 %v337
  %v454 = vpop.f32.mrb[0].mxu0
  %v455 = vadd.f32 0.0, %v454
  %v456 = vpop.f32.mrb[0].mxu0
  %457 = vmatprep.mubr.f32.mxu0 0.0
  %458 = vmatmul.mubr.f32.gmra.mrb[0].mxu0 %v339
  %v459 = vpop.f32.mrb[0].mxu0
  %v460 = vpop.f32.mrb[0].mxu0
  %v461 = vadd.f32 0.0, %v460
  %462 = vdwg.mxu0
  %463 = vmatprep.subr.mxu0 0.0
  %464 = vmatpush1.msra.mxu0 %v342
  %465 = vmatprep.subr.mxu0 0.0
  %466 = vmatpush1.msra.mxu0 %v345
  %467 = vmatprep.subr.mxu0 0.0
  %468 = vmatpush1.msra.mxu0 %v348
  %469 = vmatprep.subr.mxu0 0.0
  %470 = vmatpush1.msra.mxu0 %v351
  %471 = vmatprep.subr.mxu0 0.0
  %472 = vmatpush1.msra.mxu0 %v354
  %473 = vmatprep.subr.mxu0 0.0
  %474 = vmatpush1.msra.mxu0 %v357
  %475 = vmatprep.subr.mxu0 0.0
  %476 = vmatpush1.msra.mxu0 %v360
  %477 = vmatprep.subr.mxu0 0.0
  %478 = vmatpush1.msra.mxu0 %v363
  %479 = vmatprep.subr.mxu0 0.0
  %480 = vmatpush1.msra.mxu0 %v366
  %481 = vmatprep.subr.mxu0 0.0
  %482 = vmatpush1.msra.mxu0 %v369
  %483 = vmatprep.subr.mxu0 0.0
  %484 = vmatpush1.msra.mxu0 %v372
  %485 = vmatprep.subr.mxu0 0.0
  %486 = vmatpush1.msra.mxu0 %v375
  %487 = vmatprep.subr.mxu0 0.0
  %488 = vmatpush1.msra.mxu0 %v378
  %489 = vmatprep.subr.mxu0 0.0
  %490 = vmatpush1.msra.mxu0 %v381
  %491 = vmatprep.subr.mxu0 0.0
  %492 = vmatpush1.msra.mxu0 %v384
  %493 = vmatprep.subr.mxu0 0.0
  %494 = vmatpush1.msra.mxu0 %v387
  %495 = vmatprep.subr.mxu0 0.0
  %496 = vmatpush1.msra.mxu0 0.0
  %497 = vmatprep.subr.mxu0 0.0
  %498 = vmatpush1.msra.mxu0 0.0
  %499 = vmatprep.subr.mxu0 0.0
  %500 = vmatpush1.msra.mxu0 0.0
  %501 = vmatprep.subr.mxu0 0.0
  %502 = vmatpush1.msra.mxu0 0.0
  %503 = vmatprep.subr.mxu0 0.0
  %504 = vmatpush1.msra.mxu0 0.0
  %505 = vmatprep.subr.mxu0 0.0
  %506 = vmatpush1.msra.mxu0 0.0
  %507 = vmatprep.subr.mxu0 0.0
  %508 = vmatpush1.msra.mxu0 0.0
  %509 = vmatprep.subr.mxu0 0.0
  %510 = vmatpush1.msra.mxu0 0.0
  %511 = vmatprep.subr.mxu0 0.0
  %512 = vmatpush1.msra.mxu0 0.0
  %513 = vmatprep.subr.mxu0 0.0
  %514 = vmatpush1.msra.mxu0 0.0
  %515 = vmatprep.subr.mxu0 0.0
  %516 = vmatpush1.msra.mxu0 0.0
  %517 = vmatprep.subr.mxu0 0.0
  %518 = vmatpush1.msra.mxu0 0.0
  %519 = vmatprep.subr.mxu0 0.0
  %520 = vmatpush1.msra.mxu0 0.0
  %521 = vmatprep.subr.mxu0 0.0
  %522 = vmatpush1.msra.mxu0 0.0
  %523 = vmatprep.subr.mxu0 0.0
  %524 = vmatpush1.msra.mxu0 0.0
  %525 = vmatprep.subr.mxu0 0.0
  %526 = vmatpush1.msra.mxu0 0.0
  %527 = vmatprep.mubr.f32.mxu0 0.0
  %528 = vmatmul.mubr.f32.gmra.mrb[0].mxu0 %v337
  %v529 = vpop.f32.mrb[0].mxu0
  %v530 = vadd.f32 0.0, %v529
  %v531 = vpop.f32.mrb[0].mxu0
  %532 = vmatprep.mubr.f32.mxu0 0.0
  %533 = vmatmul.mubr.f32.gmra.mrb[0].mxu0 %v339
  %v534 = vpop.f32.mrb[0].mxu0
  %v535 = vpop.f32.mrb[0].mxu0
  %536 = vdwg.mxu0
  %v538 = vrot.slane %v530, 4
  %vm540 = vcmask 1043456
  %v541 = vsel %vm540, %v461, %v538
  %v542 = vld [vmem:[%s1] sm:$0xff]
  %v543 = vld [vmem:[%s1 + $0x8] sm:$0xff]
  %544 = vset.pattern.permute.xlu0 0
  %545 = vperm.xlu0 %544, %v542
  %v546 = vpop.permute.xlu0 %545
  %547 = vset.pattern.permute.xlu0 0
  %548 = vperm.xlu0 %547, %v543
  %v549 = vpop.permute.xlu0 %548
  %vm550 = vcmp.eq.s32.totalorder %v546, %v46
  %vm551 = vcmp.eq.s32.totalorder %v549, %v46
  %v552 = vsel %vm550, 1, 0
  %v553 = vsel %vm551, 1, 0
  %v554 = vcvt.s32.f32 %v552
  %v555 = vcvt.s32.f32 %v553
  %556 = vset.pattern.permute.xlu0 1
  %557 = vperm.xlu0 %556, %v542
  %v558 = vpop.permute.xlu0 %557
  %559 = vset.pattern.permute.xlu0 1
  %560 = vperm.xlu0 %559, %v543
  %v561 = vpop.permute.xlu0 %560
  %vm562 = vcmp.eq.s32.totalorder %v558, %v46
  %vm563 = vcmp.eq.s32.totalorder %v561, %v46
  %v564 = vsel %vm562, 1, 0
  %v565 = vsel %vm563, 1, 0
  %v566 = vcvt.s32.f32 %v564
  %v567 = vcvt.s32.f32 %v565
  %v568 = vadd.f32 %v554, %v566
  %v569 = vadd.f32 %v555, %v567
  %570 = vset.pattern.permute.xlu0 2
  %571 = vperm.xlu0 %570, %v542
  %v572 = vpop.permute.xlu0 %571
  %573 = vset.pattern.permute.xlu0 2
  %574 = vperm.xlu0 %573, %v543
  %v575 = vpop.permute.xlu0 %574
  %vm576 = vcmp.eq.s32.totalorder %v572, %v46
  %vm577 = vcmp.eq.s32.totalorder %v575, %v46
  %v578 = vsel %vm576, 1, 0
  %v579 = vsel %vm577, 1, 0
  %v580 = vcvt.s32.f32 %v578
  %v581 = vcvt.s32.f32 %v579
  %v582 = vadd.f32 %v568, %v580
  %v583 = vadd.f32 %v569, %v581
  %v584 = vld [vmem:[%s5] sm:$0x1]
  %v585 = vlaneseq
  %v586 = vshrl.u32 %v585, 7
  %v587 = vsub.s32 0, %v586
  %v588 = vrot.slane %v584, %v587
  %vm589 = vcmask 162816
  %v591 = vsel %vm589, %v582, 0
  %v594 = vsel %vm589, %v583, 0
  %v596 = vsel %vm540, %v538, 0
  %598 = vmatprep.subr.mxu0 0.0
  %599 = vmatpush1.msra.mxu0 %v455
  %600 = vmatprep.subr.mxu0 0.0
  %601 = vmatpush1.msra.mxu0 %v541
  %602 = vmatprep.subr.mxu0 0.0
  %603 = vmatpush1.msra.mxu0 %v596
  %604 = vmatprep.subr.mxu0 0.0
  %605 = vmatpush1.msra.mxu0 0.0
  %606 = vmatprep.subr.mxu0 0.0
  %607 = vmatpush1.msra.mxu0 0.0
  %608 = vmatprep.subr.mxu0 0.0
  %609 = vmatpush1.msra.mxu0 0.0
  %610 = vmatprep.subr.mxu0 0.0
  %611 = vmatpush1.msra.mxu0 0.0
  %612 = vmatprep.subr.mxu0 0.0
  %613 = vmatpush1.msra.mxu0 0.0
  %614 = vmatprep.subr.mxu0 0.0
  %615 = vmatpush1.msra.mxu0 0.0
  %616 = vmatprep.subr.mxu0 0.0
  %617 = vmatpush1.msra.mxu0 0.0
  %618 = vmatprep.subr.mxu0 0.0
  %619 = vmatpush1.msra.mxu0 0.0
  %620 = vmatprep.subr.mxu0 0.0
  %621 = vmatpush1.msra.mxu0 0.0
  %622 = vmatprep.subr.mxu0 0.0
  %623 = vmatpush1.msra.mxu0 0.0
  %624 = vmatprep.subr.mxu0 0.0
  %625 = vmatpush1.msra.mxu0 0.0
  %626 = vmatprep.subr.mxu0 0.0
  %627 = vmatpush1.msra.mxu0 0.0
  %628 = vmatprep.subr.mxu0 0.0
  %629 = vmatpush1.msra.mxu0 0.0
  %630 = vmatprep.subr.mxu0 0.0
  %631 = vmatpush1.msra.mxu0 0.0
  %632 = vmatprep.subr.mxu0 0.0
  %633 = vmatpush1.msra.mxu0 0.0
  %634 = vmatprep.subr.mxu0 0.0
  %635 = vmatpush1.msra.mxu0 0.0
  %636 = vmatprep.subr.mxu0 0.0
  %637 = vmatpush1.msra.mxu0 0.0
  %638 = vmatprep.subr.mxu0 0.0
  %639 = vmatpush1.msra.mxu0 0.0
  %640 = vmatprep.subr.mxu0 0.0
  %641 = vmatpush1.msra.mxu0 0.0
  %642 = vmatprep.subr.mxu0 0.0
  %643 = vmatpush1.msra.mxu0 0.0
  %644 = vmatprep.subr.mxu0 0.0
  %645 = vmatpush1.msra.mxu0 0.0
  %646 = vmatprep.subr.mxu0 0.0
  %647 = vmatpush1.msra.mxu0 0.0
  %648 = vmatprep.subr.mxu0 0.0
  %649 = vmatpush1.msra.mxu0 0.0
  %650 = vmatprep.subr.mxu0 0.0
  %651 = vmatpush1.msra.mxu0 0.0
  %652 = vmatprep.subr.mxu0 0.0
  %653 = vmatpush1.msra.mxu0 0.0
  %654 = vmatprep.subr.mxu0 0.0
  %655 = vmatpush1.msra.mxu0 0.0
  %656 = vmatprep.subr.mxu0 0.0
  %657 = vmatpush1.msra.mxu0 0.0
  %658 = vmatprep.subr.mxu0 0.0
  %659 = vmatpush1.msra.mxu0 0.0
  %660 = vmatprep.subr.mxu0 0.0
  %661 = vmatpush1.msra.mxu0 0.0
  %662 = vmatprep.mubr.f32.mxu0 0.0
  %663 = vmatmul.mubr.f32.gmra.mrb[0].mxu0 %v591
  %v664 = vpop.f32.mrb[0].mxu0
  %v665 = vadd.f32 %v588, %v664
  %v666 = vpop.f32.mrb[0].mxu0
  %667 = vmatprep.mubr.f32.mxu0 0.0
  %668 = vmatmul.mubr.f32.gmra.mrb[0].mxu0 %v594
  %v669 = vpop.f32.mrb[0].mxu0
  %v670 = vadd.f32 %v588, %v669
  %v671 = vpop.f32.mrb[0].mxu0
  %672 = vdwg.mxu0
  %v673 = vtanh.pop %v665
  %v674 = vtanh.pop %v670
  %vm675 = vcmp.eq.s32.totalorder %v542, 0
  %vm676 = vcmp.eq.s32.totalorder %v543, 0
  %v677 = vsel %vm675, 1, 0
  %v678 = vsel %vm676, 1, 0
  %v679 = vcvt.s32.f32 %v677
  %v680 = vcvt.s32.f32 %v678
  %682 = vset.pattern.permute.xlu0 3
  %683 = vperm.xlu0 %682, %v679
  %v684 = vpop.permute.xlu0 %683
  %687 = vset.pattern.permute.xlu0 3
  %688 = vperm.xlu0 %687, %v680
  %v689 = vpop.permute.xlu0 %688
  %v691 = vlaneseq
  %v692 = vshrl.u32 %v691, 7
  %v693 = vsub.s32 4, %v692
  %v694 = vrot.slane %v339, %v693
  %v695 = vmul.f32 %v684, %v694
  %v696 = vmul.f32 %v689, %v694
  %v697 = vadd.f32 %v695, 0.0
  %v698 = vadd.f32 %v696, 0.0
  %vm699 = vcmp.eq.s32.totalorder %v542, 1
  %vm700 = vcmp.eq.s32.totalorder %v543, 1
  %v701 = vsel %vm699, 1, 0
  %v702 = vsel %vm700, 1, 0
  %v703 = vcvt.s32.f32 %v701
  %v704 = vcvt.s32.f32 %v702
  %706 = vset.pattern.permute.xlu0 3
  %707 = vperm.xlu0 %706, %v703
  %v708 = vpop.permute.xlu0 %707
  %711 = vset.pattern.permute.xlu0 3
  %712 = vperm.xlu0 %711, %v704
  %v713 = vpop.permute.xlu0 %712
  %v715 = vlaneseq
  %v716 = vshrl.u32 %v715, 7
  %v717 = vsub.s32 5, %v716
  %v718 = vrot.slane %v339, %v717
  %v719 = vmul.f32 %v708, %v718
  %v720 = vmul.f32 %v713, %v718
  %v721 = vadd.f32 %v697, %v719
  %v722 = vadd.f32 %v698, %v720
  %v723 = vmul.f32 %v673, %v721
  %v724 = vmul.f32 %v674, %v722
  %725 = vadd.xlane.f32.xlu0 %v723
  %v726 = vpop.xlane.xlu0 %725
  %727 = vadd.xlane.f32.xlu0 %v724
  %v728 = vpop.xlane.xlu0 %727
  %v729 = vxor.u32 %v726, 2147483648
  %v730 = vxor.u32 %v728, 2147483648
  %v731 = vmul.f32 %v729, 1.442695
  %v732 = vpow.pop %v731
  %v733 = vmul.f32 %v730, 1.442695
  %v734 = vpow.pop %v733
  %v735 = vadd.f32 %v732, 1.0
  %v736 = vadd.f32 %v734, 1.0
  %v737 = vrcp.pop %v735
  %v738 = vmul.f32 1.0, %v737
  %v739 = vrcp.pop %v736
  %v740 = vmul.f32 1.0, %v739
  %v741 = vmul.f32 %v673, %v738
  %v742 = vmul.f32 %v674, %v740
  %v743 = vld [vmem:[%s5 + $0x2] sm:$0x1]
  %vm744 = vcmask 31768
  %v745 = vsel %vm744, %v679, 0.0
  %v746 = vsel %vm744, %v680, 0.0
  %v747 = vadd.f32 %v745, %v746
  %v748 = vrot.slane %v747, 4
  %v749 = vadd.f32 %v747, %v748
  %v750 = vrot.slane %v749, 2
  %v751 = vadd.f32 %v749, %v750
  %v752 = vrot.slane %v751, 1
  %v753 = vadd.f32 %v751, %v752
  %v754 = vmax.f32 %v753, 1.0
  %v755 = vmul.f32 %v741, %v684
  %v756 = vmul.f32 %v742, %v689
  %v757 = vadd.f32 %v755, %v756
  %v758 = vrot.slane %v757, 4
  %v759 = vadd.f32 %v757, %v758
  %v760 = vrot.slane %v759, 2
  %v761 = vadd.f32 %v759, %v760
  %v762 = vrot.slane %v761, 1
  %v763 = vadd.f32 %v761, %v762
  %765 = vset.pattern.permute.xlu0 3
  %766 = vperm.xlu0 %765, %v754
  %v767 = vpop.permute.xlu0 %766
  %v769 = vrcp.pop %v767
  %v770 = vmul.f32 %v763, %v769
  %v771 = vmul.f32 %v738, %v679
  %v772 = vmul.f32 %v740, %v680
  %v773 = vsel %vm744, %v771, 0.0
  %v774 = vsel %vm744, %v772, 0.0
  %v775 = vadd.f32 %v773, %v774
  %v776 = vrot.slane %v775, 4
  %v777 = vadd.f32 %v775, %v776
  %v778 = vrot.slane %v777, 2
  %v779 = vadd.f32 %v777, %v778
  %v780 = vrot.slane %v779, 1
  %v781 = vadd.f32 %v779, %v780
  %v782 = vrcp.pop %v754
  %v783 = vmul.f32 %v781, %v782
  %v784 = vsub.f32 1.0, %v743
  %v785 = vmul.f32 %v770, %v784
  %787 = vset.pattern.permute.xlu0 3
  %788 = vperm.xlu0 %787, %v783
  %v789 = vpop.permute.xlu0 %788
  %v791 = vmul.f32 %v789, %v743
  %v792 = vadd.f32 %v785, %v791
  %v793 = vsel %vm744, %v703, 0.0
  %v794 = vsel %vm744, %v704, 0.0
  %v795 = vadd.f32 %v793, %v794
  %v796 = vrot.slane %v795, 4
  %v797 = vadd.f32 %v795, %v796
  %v798 = vrot.slane %v797, 2
  %v799 = vadd.f32 %v797, %v798
  %v800 = vrot.slane %v799, 1
  %v801 = vadd.f32 %v799, %v800
  %v802 = vmax.f32 %v801, 1.0
  %v803 = vmul.f32 %v741, %v708
  %v804 = vmul.f32 %v742, %v713
  %v805 = vadd.f32 %v803, %v804
  %v806 = vrot.slane %v805, 4
  %v807 = vadd.f32 %v805, %v806
  %v808 = vrot.slane %v807, 2
  %v809 = vadd.f32 %v807, %v808
  %v810 = vrot.slane %v809, 1
  %v811 = vadd.f32 %v809, %v810
  %813 = vset.pattern.permute.xlu0 3
  %814 = vperm.xlu0 %813, %v802
  %v815 = vpop.permute.xlu0 %814
  %v817 = vrcp.pop %v815
  %v818 = vmul.f32 %v811, %v817
  %v819 = vmul.f32 %v738, %v703
  %v820 = vmul.f32 %v740, %v704
  %v821 = vsel %vm744, %v819, 0.0
  %v822 = vsel %vm744, %v820, 0.0
  %v823 = vadd.f32 %v821, %v822
  %v824 = vrot.slane %v823, 4
  %v825 = vadd.f32 %v823, %v824
  %v826 = vrot.slane %v825, 2
  %v827 = vadd.f32 %v825, %v826
  %v828 = vrot.slane %v827, 1
  %v829 = vadd.f32 %v827, %v828
  %v830 = vrcp.pop %v802
  %v831 = vmul.f32 %v829, %v830
  %v832 = vmul.f32 %v818, %v784
  %834 = vset.pattern.permute.xlu0 3
  %835 = vperm.xlu0 %834, %v831
  %v836 = vpop.permute.xlu0 %835
  %v838 = vmul.f32 %v836, %v743
  %v839 = vadd.f32 %v832, %v838
  %v840 = vadd.f32 %v318, %v770
  %v841 = vadd.f32 %v323, %v818
  %v842 = vld [vmem:[%s5 + $0x1] sm:$0x1]
  %v843 = vld [vmem:[%s6] sm:$0xff]
  %v844 = vld [vmem:[%s6 + $0x8] sm:$0xff]
  %v845 = vld [vmem:[%s6 + $0x10] sm:$0xff]
  %v846 = vld [vmem:[%s6 + $0x18] sm:$0xff]
  %v847 = vld [vmem:[%s6 + $0x20] sm:$0xff]
  %v848 = vld [vmem:[%s6 + $0x28] sm:$0xff]
  %v849 = vld [vmem:[%s6 + $0x30] sm:$0xff]
  %v850 = vld [vmem:[%s6 + $0x38] sm:$0xff]
  %v851 = vld [vmem:[%s6 + $0x40] sm:$0xff]
  %v852 = vld [vmem:[%s6 + $0x48] sm:$0xff]
  %v853 = vld [vmem:[%s6 + $0x50] sm:$0xff]
  %v854 = vld [vmem:[%s6 + $0x58] sm:$0xff]
  %v855 = vld [vmem:[%s6 + $0x60] sm:$0xff]
  %v856 = vld [vmem:[%s6 + $0x68] sm:$0xff]
  %v857 = vld [vmem:[%s6 + $0x70] sm:$0xff]
  %v858 = vld [vmem:[%s6 + $0x78] sm:$0xff]
  %v859 = vlaneseq
  %v860 = vshrl.u32 %v859, 7
  %v861 = vsub.s32 0, %v860
  %v862 = vrot.slane %v842, %v861
  %863 = vmatprep.subr.mxu0 0.0
  %864 = vmatpush1.msra.mxu0 %v843
  %865 = vmatprep.subr.mxu0 0.0
  %866 = vmatpush1.msra.mxu0 %v844
  %867 = vmatprep.subr.mxu0 0.0
  %868 = vmatpush1.msra.mxu0 %v845
  %869 = vmatprep.subr.mxu0 0.0
  %870 = vmatpush1.msra.mxu0 %v846
  %871 = vmatprep.subr.mxu0 0.0
  %872 = vmatpush1.msra.mxu0 %v847
  %873 = vmatprep.subr.mxu0 0.0
  %874 = vmatpush1.msra.mxu0 %v848
  %875 = vmatprep.subr.mxu0 0.0
  %876 = vmatpush1.msra.mxu0 %v849
  %877 = vmatprep.subr.mxu0 0.0
  %878 = vmatpush1.msra.mxu0 %v850
  %879 = vmatprep.subr.mxu0 0.0
  %880 = vmatpush1.msra.mxu0 %v851
  %881 = vmatprep.subr.mxu0 0.0
  %882 = vmatpush1.msra.mxu0 %v852
  %883 = vmatprep.subr.mxu0 0.0
  %884 = vmatpush1.msra.mxu0 %v853
  %885 = vmatprep.subr.mxu0 0.0
  %886 = vmatpush1.msra.mxu0 %v854
  %887 = vmatprep.subr.mxu0 0.0
  %888 = vmatpush1.msra.mxu0 %v855
  %889 = vmatprep.subr.mxu0 0.0
  %890 = vmatpush1.msra.mxu0 %v856
  %891 = vmatprep.subr.mxu0 0.0
  %892 = vmatpush1.msra.mxu0 %v857
  %893 = vmatprep.subr.mxu0 0.0
  %894 = vmatpush1.msra.mxu0 %v858
  %895 = vmatprep.subr.mxu0 0.0
  %896 = vmatpush1.msra.mxu0 0.0
  %897 = vmatprep.subr.mxu0 0.0
  %898 = vmatpush1.msra.mxu0 0.0
  %899 = vmatprep.subr.mxu0 0.0
  %900 = vmatpush1.msra.mxu0 0.0
  %901 = vmatprep.subr.mxu0 0.0
  %902 = vmatpush1.msra.mxu0 0.0
  %903 = vmatprep.subr.mxu0 0.0
  %904 = vmatpush1.msra.mxu0 0.0
  %905 = vmatprep.subr.mxu0 0.0
  %906 = vmatpush1.msra.mxu0 0.0
  %907 = vmatprep.subr.mxu0 0.0
  %908 = vmatpush1.msra.mxu0 0.0
  %909 = vmatprep.subr.mxu0 0.0
  %910 = vmatpush1.msra.mxu0 0.0
  %911 = vmatprep.subr.mxu0 0.0
  %912 = vmatpush1.msra.mxu0 0.0
  %913 = vmatprep.subr.mxu0 0.0
  %914 = vmatpush1.msra.mxu0 0.0
  %915 = vmatprep.subr.mxu0 0.0
  %916 = vmatpush1.msra.mxu0 0.0
  %917 = vmatprep.subr.mxu0 0.0
  %918 = vmatpush1.msra.mxu0 0.0
  %919 = vmatprep.subr.mxu0 0.0
  %920 = vmatpush1.msra.mxu0 0.0
  %921 = vmatprep.subr.mxu0 0.0
  %922 = vmatpush1.msra.mxu0 0.0
  %923 = vmatprep.subr.mxu0 0.0
  %924 = vmatpush1.msra.mxu0 0.0
  %925 = vmatprep.subr.mxu0 0.0
  %926 = vmatpush1.msra.mxu0 0.0
  %927 = vmatprep.mubr.f32.mxu0 0.0
  %928 = vmatmul.mubr.f32.gmra.mrb[0].mxu0 %v840
  %v929 = vpop.f32.mrb[0].mxu0
  %v930 = vadd.f32 %v862, %v929
  %v931 = vpop.f32.mrb[0].mxu0
  %932 = vmatprep.mubr.f32.mxu0 0.0
  %933 = vmatmul.mubr.f32.gmra.mrb[0].mxu0 %v841
  %v934 = vpop.f32.mrb[0].mxu0
  %v935 = vadd.f32 %v862, %v934
  %v936 = vpop.f32.mrb[0].mxu0
  %937 = vdwg.mxu0
  %v938 = vmul.f32 %v930, %v930
  %v939 = vmul.f32 %v935, %v935
  %v940 = vmul.f32 %v930, %v938
  %v941 = vmul.f32 %v935, %v939
  %v942 = vmul.f32 %v940, 0.044715
  %v943 = vmul.f32 %v941, 0.044715
  %v944 = vadd.f32 %v930, %v942
  %v945 = vadd.f32 %v935, %v943
  %v946 = vmul.f32 %v944, 0.7978846
  %v947 = vmul.f32 %v945, 0.7978846
  %v948 = vtanh.pop %v946
  %v949 = vtanh.pop %v947
  %v950 = vadd.f32 %v948, 1.0
  %v951 = vadd.f32 %v949, 1.0
  %v952 = vmul.f32 %v950, 0.5
  %v953 = vmul.f32 %v951, 0.5
  %v954 = vmul.f32 %v930, %v952
  %v955 = vmul.f32 %v935, %v953
  %v956 = vld [vmem:[%s7] sm:$0xff]
  %v957 = vld [vmem:[%s7 + $0x8] sm:$0xff]
  %v958 = vld [vmem:[%s7 + $0x10] sm:$0xff]
  %v959 = vld [vmem:[%s7 + $0x18] sm:$0xff]
  %v960 = vld [vmem:[%s7 + $0x20] sm:$0xff]
  %v961 = vld [vmem:[%s7 + $0x28] sm:$0xff]
  %v962 = vld [vmem:[%s7 + $0x30] sm:$0xff]
  %v963 = vld [vmem:[%s7 + $0x38] sm:$0xff]
  %v964 = vld [vmem:[%s7 + $0x40] sm:$0xff]
  %v965 = vld [vmem:[%s7 + $0x48] sm:$0xff]
  %v966 = vld [vmem:[%s7 + $0x50] sm:$0xff]
  %v967 = vld [vmem:[%s7 + $0x58] sm:$0xff]
  %v968 = vld [vmem:[%s7 + $0x60] sm:$0xff]
  %v969 = vld [vmem:[%s7 + $0x68] sm:$0xff]
  %v970 = vld [vmem:[%s7 + $0x70] sm:$0xff]
  %v971 = vld [vmem:[%s7 + $0x78] sm:$0xff]
  %972 = vmatprep.subr.mxu0 0.0
  %973 = vmatpush1.msra.mxu0 %v956
  %974 = vmatprep.subr.mxu0 0.0
  %975 = vmatpush1.msra.mxu0 %v957
  %976 = vmatprep.subr.mxu0 0.0
  %977 = vmatpush1.msra.mxu0 %v958
  %978 = vmatprep.subr.mxu0 0.0
  %979 = vmatpush1.msra.mxu0 %v959
  %980 = vmatprep.subr.mxu0 0.0
  %981 = vmatpush1.msra.mxu0 %v960
  %982 = vmatprep.subr.mxu0 0.0
  %983 = vmatpush1.msra.mxu0 %v961
  %984 = vmatprep.subr.mxu0 0.0
  %985 = vmatpush1.msra.mxu0 %v962
  %986 = vmatprep.subr.mxu0 0.0
  %987 = vmatpush1.msra.mxu0 %v963
  %988 = vmatprep.subr.mxu0 0.0
  %989 = vmatpush1.msra.mxu0 %v964
  %990 = vmatprep.subr.mxu0 0.0
  %991 = vmatpush1.msra.mxu0 %v965
  %992 = vmatprep.subr.mxu0 0.0
  %993 = vmatpush1.msra.mxu0 %v966
  %994 = vmatprep.subr.mxu0 0.0
  %995 = vmatpush1.msra.mxu0 %v967
  %996 = vmatprep.subr.mxu0 0.0
  %997 = vmatpush1.msra.mxu0 %v968
  %998 = vmatprep.subr.mxu0 0.0
  %999 = vmatpush1.msra.mxu0 %v969
  %1000 = vmatprep.subr.mxu0 0.0
  %1001 = vmatpush1.msra.mxu0 %v970
  %1002 = vmatprep.subr.mxu0 0.0
  %1003 = vmatpush1.msra.mxu0 %v971
  %1004 = vmatprep.subr.mxu0 0.0
  %1005 = vmatpush1.msra.mxu0 0.0
  %1006 = vmatprep.subr.mxu0 0.0
  %1007 = vmatpush1.msra.mxu0 0.0
  %1008 = vmatprep.subr.mxu0 0.0
  %1009 = vmatpush1.msra.mxu0 0.0
  %1010 = vmatprep.subr.mxu0 0.0
  %1011 = vmatpush1.msra.mxu0 0.0
  %1012 = vmatprep.subr.mxu0 0.0
  %1013 = vmatpush1.msra.mxu0 0.0
  %1014 = vmatprep.subr.mxu0 0.0
  %1015 = vmatpush1.msra.mxu0 0.0
  %1016 = vmatprep.subr.mxu0 0.0
  %1017 = vmatpush1.msra.mxu0 0.0
  %1018 = vmatprep.subr.mxu0 0.0
  %1019 = vmatpush1.msra.mxu0 0.0
  %1020 = vmatprep.subr.mxu0 0.0
  %1021 = vmatpush1.msra.mxu0 0.0
  %1022 = vmatprep.subr.mxu0 0.0
  %1023 = vmatpush1.msra.mxu0 0.0
  %1024 = vmatprep.subr.mxu0 0.0
  %1025 = vmatpush1.msra.mxu0 0.0
  %1026 = vmatprep.subr.mxu0 0.0
  %1027 = vmatpush1.msra.mxu0 0.0
  %1028 = vmatprep.subr.mxu0 0.0
  %1029 = vmatpush1.msra.mxu0 0.0
  %1030 = vmatprep.subr.mxu0 0.0
  %1031 = vmatpush1.msra.mxu0 0.0
  %1032 = vmatprep.subr.mxu0 0.0
  %1033 = vmatpush1.msra.mxu0 0.0
  %1034 = vmatprep.subr.mxu0 0.0
  %1035 = vmatpush1.msra.mxu0 0.0
  %1036 = vmatprep.mubr.f32.mxu0 0.0
  %1037 = vmatmul.mubr.f32.gmra.mrb[0].mxu0 %v954
  %v1038 = vpop.f32.mrb[0].mxu0
  %v1039 = vadd.f32 0.0, %v1038
  %v1040 = vpop.f32.mrb[0].mxu0
  %1041 = vmatprep.mubr.f32.mxu0 0.0
  %1042 = vmatmul.mubr.f32.gmra.mrb[0].mxu0 %v955
  %v1043 = vpop.f32.mrb[0].mxu0
  %v1044 = vadd.f32 0.0, %v1043
  %v1045 = vpop.f32.mrb[0].mxu0
  %1046 = vdwg.mxu0
  %v1048 = vrot.slane %v839, 7
  %vm1050 = vcmask 1040384
  %v1051 = vsel %vm1050, %v792, %v1048
  %1052 = vst [vmem:[%s8] sm:$0xff] %v1039
  %1053 = vst [vmem:[%s8 + $0x8] sm:$0xff] %v1044
  %1054 = vst [vmem:[%s8 + $0x10] sm:$0x3] %v1051
  // Predicated region
  $region34: #{model_forward.1} parent=0 // pred_check
    _
  $region35: #{model_forward.1} parent=0 // pred_check_branch
    %1056 = sbr.rel (0) target = $region37
  $region36: #{model_forward.1} parent=0 // pred_region
    _
  $region37: #{model_forward.1} parent=0 // pred_fallthru
    _
  // Predicated region
  $region38: #{model_forward.1} parent=0 // pred_check
    _
  $region39: #{model_forward.1} parent=0 // pred_check_branch
    %1058 = sbr.rel (0) target = $region41
  $region40: #{model_forward.1} parent=0 // pred_region
    _
  $region41: #{model_forward.1} parent=0 // pred_fallthru
    _

</llo_original>
